<compile_context>
chip_gen: v7x
topology: tpu7x:2x2x1
jax: 0.10.0
libtpu: 0.0.40
codegen_flags: <defaults>
</compile_context>

<pallas_src>
import functools

import jax
import jax.numpy as jnp
from jax.experimental import pallas as pl
from jax.experimental.pallas import tpu as pltpu

_EPS = 1e-8    # PyTorch nn.CosineSimilarity default eps
_TEMP = 0.05   # RecformerConfig.temp default


def _round_up(v, m):
    return (v + m - 1) // m * m


def _vmem_limit_bytes():
    """~75% of physical VMEM, floor 32 MiB, cap 96 MiB (v7x -> ~48 MiB)."""
    try:
        cap = int(pltpu.get_tpu_info().vmem_capacity_bytes)
    except Exception:
        cap = 64 * 1024 * 1024
    return int(min(max(cap * 3 // 4, 32 * 1024 * 1024), 96 * 1024 * 1024))


# ---------------------------------------------------------------------------
# Kernels
# ---------------------------------------------------------------------------
def _cross_cos_kernel(x_ref, y_ref, w1_ref, w2_ref, o_ref, *, clamp, separable):
    """x_ref: (tm, H), y_ref: (tn, H), w1_ref: (tm, 1), w2_ref: (1, tn),
    o_ref: (tm, tn).

    Cosine similarity of every row of x against every row of y, / temp.
    Norm vectors are precomputed outside the grid; 1/temp is folded into them.
    """
    # MXU matmul in the native input dtype, f32 accumulate; contraction over
    # the last dim of both operands (x @ y^T without materializing y.T).
    dots = jax.lax.dot_general(
        x_ref[...], y_ref[...],
        dimension_numbers=(((1,), (1,)), ((), ())),
        preferred_element_type=jnp.float32)                     # (tm, tn)

    if separable:
        # w1_ref = rsqrt(max(w1, eps)); w2_ref = rsqrt(max(w2, eps)) / temp
        o_ref[...] = (dots * w1_ref[...] * w2_ref[...]).astype(o_ref.dtype)
    else:
        # w1_ref = w1; w2_ref = w2 * temp^2; clamp = (eps*temp)^2  (exact,
        # product-form eps semantics identical to ATen)
        inv = jax.lax.rsqrt(jnp.maximum(w1_ref[...] * w2_ref[...], clamp))
        o_ref[...] = (dots * inv).astype(o_ref.dtype)


def _rowwise_cos_kernel(x_ref, y_ref, o_ref, *, temp):
    """x_ref, y_ref: (tr, H) or (1, H) [streamed broadcast operand];
    o_ref: (1, tr) lane-dense row of results."""
    x = x_ref[...].astype(jnp.float32)
    y = y_ref[...].astype(jnp.float32)
    w12 = jnp.sum(x * y, axis=-1, keepdims=True)                # (tr, 1)
    w1 = jnp.sum(x * x, axis=-1, keepdims=True)
    w2 = jnp.sum(y * y, axis=-1, keepdims=True)
    # 1/temp folded into the clamp/product (exact for temp > 0).
    t2 = temp * temp
    inv = jax.lax.rsqrt(jnp.maximum(w1 * w2 * t2, (_EPS * temp) ** 2))
    o_ref[...] = (w12 * inv).T.astype(o_ref.dtype)              # (1, tr)


# ---------------------------------------------------------------------------
# Wrapper (glue: broadcasting / padding / reshapes stay in plain JAX)
# ---------------------------------------------------------------------------
def similarity(x, y, temp=_TEMP, *, block_m=256, block_n=512, block_r=1024,
               separable_rsqrt=False, mxu_bf16=False):
    """JAX/Pallas equivalent of Similarity.forward(x, y).

    block_m: cross-path M tile (multiple of 8). block_n: cross-path N tile
    (multiple of 128) -- keep tiles >= 256 on every generation (v5e included).
    block_r: row-tile size for the general elementwise/broadcast path
    (VMEM-adapted to H automatically).
    separable_rsqrt / mxu_bf16: opt-in speed knobs that relax eps-clamp /
    accumulation bit-compatibility with ATen.
    """
    x = jnp.asarray(x)
    y = jnp.asarray(y)
    out_dtype = jnp.result_type(x, y)
    temp = float(temp)
    vmem_limit = _vmem_limit_bytes()

    # --- RecFormer contrastive pattern: x (M, 1, H) vs y (1, N, H) -> (M, N)
    if (x.ndim == 3 and y.ndim == 3 and x.shape[1] == 1 and y.shape[0] == 1
            and x.shape[2] == y.shape[2]):
        x2 = x[:, 0, :]            # (M, H)
        y2 = y[0, :, :]            # (N, H)
        M, H = x2.shape
        N = y2.shape[0]

        # M tiling (sublane axis of x tile and of the output).
        if M >= block_m:
            tm = block_m
            Mp = _round_up(M, tm)
        else:
            Mp = _round_up(M, 8)
            tm = Mp

        # N tiling (lane axis of the output). Keep >= 2 outer tiles when N is
        # large enough so v7x megacore shards the "parallel" axis across both
        # TensorCores.
        if N >= block_n:
            tn = block_n
            Np = _round_up(N, tn)
            if Np == tn:                       # single outer tile -> split
                tn = max(128, tn // 2)
        elif N > 256:
            Np = _round_up(N, 256)
            tn = Np // 2                       # two tiles, multiple of 128
        else:
            Np = _round_up(N, 8)
            tn = Np

        if Mp != M:
            x2 = jnp.pad(x2, ((0, Mp - M), (0, 0)))
        if Np != N:
            y2 = jnp.pad(y2, ((0, Np - N), (0, 0)))

        # Prepass: f32 row norms computed exactly ONCE (fused XLA reductions),
        # streamed into every grid step as tiny vectors.
        w1 = jnp.sum(jnp.square(x2.astype(jnp.float32)), axis=-1,
                     keepdims=True)                              # (Mp, 1)
        w2 = jnp.sum(jnp.square(y2.astype(jnp.float32)), axis=-1)[None, :]  # (1, Np)
        if separable_rsqrt:
            w1v = jax.lax.rsqrt(jnp.maximum(w1, _EPS))
            w2v = jax.lax.rsqrt(jnp.maximum(w2, _EPS)) * (1.0 / temp)
            clamp = 0.0  # unused
        else:
            w1v = w1
            w2v = w2 * (temp * temp)
            clamp = (_EPS * temp) ** 2

        # Optional bf16 MXU contraction for f32 inputs (norms stay f32).
        if mxu_bf16 and x2.dtype == jnp.float32:
            x2 = x2.astype(jnp.bfloat16)
        if mxu_bf16 and y2.dtype == jnp.float32:
            y2 = y2.astype(jnp.bfloat16)

        # TODO(synk): if H ever exceeds a few K, add a K grid axis with an f32
        # (tm, tn) accumulator instead of loading the full-H blocks.
        kernel = functools.partial(_cross_cos_kernel, clamp=clamp,
                                   separable=separable_rsqrt)
        out = pl.pallas_call(
            kernel,
            out_shape=jax.ShapeDtypeStruct((Mp, Np), out_dtype),
            grid=(Np // tn, Mp // tm),                  # (N tiles, M tiles)
            in_specs=[
                pl.BlockSpec((tm, H), lambda j, i: (i, 0)),   # x tile
                pl.BlockSpec((tn, H), lambda j, i: (j, 0)),   # y tile
                pl.BlockSpec((tm, 1), lambda j, i: (i, 0)),   # w1 vector
                pl.BlockSpec((1, tn), lambda j, i: (0, j)),   # w2 vector
            ],
            out_specs=pl.BlockSpec((tm, tn), lambda j, i: (i, j)),
            compiler_params=pltpu.CompilerParams(
                dimension_semantics=("parallel", "parallel"),
                vmem_limit_bytes=vmem_limit),
        )(x2, y2, w1v, w2v)
        return out[:M, :N]

    # --- General broadcast path (row-paired cosine over broadcast batch) ---
    bshape = jnp.broadcast_shapes(x.shape, y.shape)
    H = bshape[-1]
    batch_shape = bshape[:-1]
    R = 1
    for d in batch_shape:
        R *= d

    def _prep(a):
        """Return (2-D operand, streamed_flag) without materializing the
        broadcast when the operand already covers the full batch or is a
        singleton along all batch dims."""
        ab = 1
        for d in a.shape[:-1]:
            ab *= d
        if a.shape[-1] == H:
            if ab == R:
                return a.reshape(R, H), False
            if ab == 1:
                return a.reshape(1, H), True       # streamed once
        # TODO(synk): express general N-d broadcasting via BlockSpec index
        # maps instead of materializing the broadcast copy in HBM.
        return jnp.broadcast_to(a, bshape).reshape(R, H), False

    xf, x_stream = _prep(x)
    yf, y_stream = _prep(y)

    # VMEM-adaptive row tile (2 operands x double buffer), lane-dense output.
    itemsize = max(xf.dtype.itemsize, yf.dtype.itemsize, 4)
    per_row = 2 * 2 * H * itemsize
    budget = min(vmem_limit // 2, 16 * 1024 * 1024)
    tr_cap = max(128, (budget // per_row) // 128 * 128)
    br = min(block_r, tr_cap)
    if R >= br:
        tr = br
        Rp = _round_up(R, tr)
    else:
        Rp = _round_up(R, 8)
        tr = Rp

    def _pad_rows(a, streamed):
        if streamed or Rp == R:
            return a
        return jnp.pad(a, ((0, Rp - R), (0, 0)))

    xf = _pad_rows(xf, x_stream)
    yf = _pad_rows(yf, y_stream)

    x_spec = (pl.BlockSpec((1, H), lambda i: (0, 0)) if x_stream
              else pl.BlockSpec((tr, H), lambda i: (i, 0)))
    y_spec = (pl.BlockSpec((1, H), lambda i: (0, 0)) if y_stream
              else pl.BlockSpec((tr, H), lambda i: (i, 0)))

    kernel = functools.partial(_rowwise_cos_kernel, temp=temp)
    out = pl.pallas_call(
        kernel,
        out_shape=jax.ShapeDtypeStruct((1, Rp), out_dtype),
        grid=(Rp // tr,),
        in_specs=[x_spec, y_spec],
        out_specs=pl.BlockSpec((1, tr), lambda i: (0, i)),  # lane-dense row
        compiler_params=pltpu.CompilerParams(
            dimension_semantics=("parallel",),
            vmem_limit_bytes=vmem_limit),
    )(xf, yf)
    return out[0, :R].reshape(batch_shape)


# ---------------------------------------------------------------------------
# Reference (pure JAX) for verification
# ---------------------------------------------------------------------------
def _similarity_ref(x, y, temp=_TEMP):
    w12 = jnp.sum(x * y, axis=-1)
    w1 = jnp.sum(x * x, axis=-1)
    w2 = jnp.sum(y * y, axis=-1)
    return w12 / jnp.sqrt(jnp.maximum(w1 * w2, _EPS * _EPS)) / temp


if __name__ == "__main__":
    key = jax.random.PRNGKey(0)
    kx, ky = jax.random.split(key)

    # 1) RecFormer usage: z1.unsqueeze(1) vs z2.unsqueeze(0)
    B, H = 8, 32
    x = jax.random.normal(kx, (B, 1, H), dtype=jnp.float32)
    y = jax.random.normal(ky, (1, B, H), dtype=jnp.float32)
    out = jax.block_until_ready(similarity(x, y))
    ref = _similarity_ref(x, y)
    assert out.shape == ref.shape == (B, B), (out.shape, ref.shape)
    assert jnp.allclose(out, ref, atol=1e-3, rtol=1e-4), \
        float(jnp.max(jnp.abs(out - ref)))

    # 2) Multi-tile cross path: grid, M/N padding, norm-vector BlockSpecs
    #    (M=24 -> pad to 32 with tm=16; N=256 with tn=128 -> 2 N tiles).
    M2, N2, H2 = 24, 256, 64
    x3 = jax.random.normal(kx, (M2, 1, H2), dtype=jnp.float32)
    y3 = jax.random.normal(ky, (1, N2, H2), dtype=jnp.float32)
    out3 = jax.block_until_ready(similarity(x3, y3, block_m=16, block_n=128))
    ref3 = _similarity_ref(x3, y3)
    assert out3.shape == (M2, N2)
    assert jnp.allclose(out3, ref3, atol=1e-3, rtol=1e-4), \
        float(jnp.max(jnp.abs(out3 - ref3)))

    # 3) Megacore split branch (N == block_n -> 2 outer tiles of tn=256).
    M4, N4, H4 = 8, 512, 64
    x4 = jax.random.normal(kx, (M4, 1, H4), dtype=jnp.float32)
    y4 = jax.random.normal(ky, (1, N4, H4), dtype=jnp.float32)
    out4 = jax.block_until_ready(similarity(x4, y4))
    ref4 = _similarity_ref(x4, y4)
    assert out4.shape == (M4, N4)
    assert jnp.allclose(out4, ref4, atol=1e-3, rtol=1e-4), \
        float(jnp.max(jnp.abs(out4 - ref4)))

    # 4) Opt-in knobs: separable rsqrt + bf16 MXU contraction (looser tol).
    out5 = jax.block_until_ready(
        similarity(x, y, separable_rsqrt=True, mxu_bf16=True))
    assert jnp.allclose(out5, ref, atol=0.5, rtol=2e-2), \
        float(jnp.max(jnp.abs(out5 - ref)))

    # 5) General (same-shape) elementwise path — no broadcast materialization.
    x2 = jax.random.normal(kx, (2, 4, H), dtype=jnp.float32)
    y2 = jax.random.normal(ky, (2, 4, H), dtype=jnp.float32)
    out2 = jax.block_until_ready(similarity(x2, y2))
    ref2 = _similarity_ref(x2, y2)
    assert out2.shape == (2, 4)
    assert jnp.allclose(out2, ref2, atol=1e-3, rtol=1e-4), \
        float(jnp.max(jnp.abs(out2 - ref2)))

    # 6) General path with a singleton-batch (streamed) operand.
    x6 = jax.random.normal(kx, (1, 1, H), dtype=jnp.float32)
    out6 = jax.block_until_ready(similarity(x6, y2))
    ref6 = _similarity_ref(x6, y2)
    assert out6.shape == (2, 4)
    assert jnp.allclose(out6, ref6, atol=1e-3, rtol=1e-4), \
        float(jnp.max(jnp.abs(out6 - ref6)))

    print("KERNEL_OK")
</pallas_src>

<mosaic_0001>
module attributes {stable_mosaic.version = 11 : i64} {
  func.func @_cross_cos_kernel(%arg0: i32, %arg1: i32, %arg2: memref<8x32xf32, #tpu.memory_space<vmem>>, %arg3: memref<8x32xf32, #tpu.memory_space<vmem>>, %arg4: memref<8x1xf32, #tpu.memory_space<vmem>>, %arg5: memref<1x8xf32, #tpu.memory_space<vmem>>, %arg6: memref<8x8xf32, #tpu.memory_space<vmem>>) attributes {dimension_semantics = [#tpu.dimension_semantics<parallel>, #tpu.dimension_semantics<parallel>], iteration_bounds = array<i64: 1, 1>, scalar_prefetch = 0 : i64, scratch_operands = 0 : i64, tpu.core_type = #tpu.core_type<tc>, window_params = [{transform_indices = @transform_0, window_bounds = array<i64: 8, 32>}, {transform_indices = @transform_1, window_bounds = array<i64: 8, 32>}, {transform_indices = @transform_2, window_bounds = array<i64: 8, 1>}, {transform_indices = @transform_3, window_bounds = array<i64: 1, 8>}, {transform_indices = @transform_4, window_bounds = array<i64: 8, 8>}]} {
    %c0 = arith.constant 0 : index
    %c0_0 = arith.constant 0 : index
    %0 = vector.load %arg2[%c0, %c0_0] : memref<8x32xf32, #tpu.memory_space<vmem>>, vector<8x32xf32>
    %c0_1 = arith.constant 0 : index
    %c0_2 = arith.constant 0 : index
    %1 = vector.load %arg3[%c0_1, %c0_2] : memref<8x32xf32, #tpu.memory_space<vmem>>, vector<8x32xf32>
    %cst = arith.constant dense<0.000000e+00> : vector<8x8xf32>
    %2 = tpu.matmul %0, %1, %cst {dimension_numbers = #tpu.dot_dimension_numbers<[1], [1], [0], [0], [0, 0, 1, 0], [], []>} : vector<8x32xf32>, vector<8x32xf32>, vector<8x8xf32> -> vector<8x8xf32>
    %c0_3 = arith.constant 0 : index
    %c0_4 = arith.constant 0 : index
    %3 = vector.load %arg4[%c0_3, %c0_4] : memref<8x1xf32, #tpu.memory_space<vmem>>, vector<8x1xf32>
    %c0_5 = arith.constant 0 : index
    %c0_6 = arith.constant 0 : index
    %4 = vector.load %arg5[%c0_5, %c0_6] : memref<1x8xf32, #tpu.memory_space<vmem>>, vector<1x8xf32>
    %5 = vector.broadcast %3 : vector<8x1xf32> to vector<8x8xf32>
    %6 = vector.broadcast %4 : vector<1x8xf32> to vector<8x8xf32>
    %7 = arith.mulf %5, %6 : vector<8x8xf32>
    %cst_7 = arith.constant 2.500000e-19 : f32
    %8 = vector.broadcast %cst_7 : f32 to vector<8x8xf32>
    %9 = arith.maximumf %7, %8 : vector<8x8xf32>
    %10 = math.rsqrt %9 : vector<8x8xf32>
    %11 = arith.mulf %2, %10 : vector<8x8xf32>
    %c0_8 = arith.constant 0 : index
    %c0_9 = arith.constant 0 : index
    %12 = vector.load %arg6[%c0_8, %c0_9] : memref<8x8xf32, #tpu.memory_space<vmem>>, vector<8x8xf32>
    tpu.vector_store %arg6[%c0_8, %c0_9], %11 {strides = array<i32>} : memref<8x8xf32, #tpu.memory_space<vmem>>, vector<8x8xf32>,
    return
  }
  func.func @transform_0(%arg0: i32, %arg1: i32) -> (i32, i32) {
    %c0_i32 = arith.constant 0 : i32
    %c0_i32_0 = arith.constant 0 : i32
    return %arg1, %c0_i32 : i32, i32
  }
  func.func @transform_1(%arg0: i32, %arg1: i32) -> (i32, i32) {
    %c0_i32 = arith.constant 0 : i32
    %c0_i32_0 = arith.constant 0 : i32
    return %arg0, %c0_i32 : i32, i32
  }
  func.func @transform_2(%arg0: i32, %arg1: i32) -> (i32, i32) {
    %c0_i32 = arith.constant 0 : i32
    %c0_i32_0 = arith.constant 0 : i32
    return %arg1, %c0_i32 : i32, i32
  }
  func.func @transform_3(%arg0: i32, %arg1: i32) -> (i32, i32) {
    %c0_i32 = arith.constant 0 : i32
    %c0_i32_0 = arith.constant 0 : i32
    return %c0_i32, %arg0 : i32, i32
  }
  func.func @transform_4(%arg0: i32, %arg1: i32) -> (i32, i32) {
    %c0_i32 = arith.constant 0 : i32
    return %arg1, %arg0 : i32, i32
  }
}

</mosaic_0001>

<llo_original>
// kernel: tpu_custom_call.1
$region0: #{tpu_custom_call.1}
  #allocation0 [shape = 'u32[]', space=smem, size = 0x4, offset = 0x4, fixed_abs, tag = 'smem constant byte address 0x4 - core index']
  #allocation1 [shape = 'u32[144,128]{1,0:T(1,128)}', space=vmem, size = 0x12000, scoped, tag = 'internal scratch']
  %s0 = inlined_call_operand.vmem [shape: f32[8,32], index: 0, kind: input, shape index: {}]
  %s1 = inlined_call_operand.hbm [shape: f32[8,32], index: 1, kind: input, shape index: {}]
  %s2 = inlined_call_operand.vmem [shape: f32[8,1], index: 2, kind: input, shape index: {}]
  %s3 = inlined_call_operand.vmem [shape: f32[1,8], index: 3, kind: input, shape index: {}]
  %s4 = inlined_call_operand.hbm [shape: f32[8,8], index: 4, kind: output, shape index: {}]
  %s5 = sld [smem:[#allocation0]]
  $region30: #{tpu_custom_call.1} parent=0
    _
  %s7 = ssub.s32 1, %s5
  %s8 = scalar_select 0, %s7, %s5
  $region1: #{tpu_custom_call.1} parent=0
    #allocation2 [shape = 'u8[4096]{0}', space=vmem, size = 0x1000, scoped, tag = 'input window, operand 1, single buffered']
    #allocation3 [shape = 's32[1]{0}', space=sflag, size = 0x4, scoped, tag = 'scoped memory for tpu_custom_call.1']
    #allocation4 [shape = 's32[1]{0}', space=sflag, size = 0x4, scoped, tag = 'scoped memory for tpu_custom_call.1']
    #allocation5 [shape = 'u8[4096]{0}', space=vmem, size = 0x1000, scoped, tag = 'output window, operand 0, single buffered']
    %9 = vsyncpa [#allocation3], 0
    %10 = vsyncpa [#allocation4], 0
    // Predicated region
    $region2: #{tpu_custom_call.1} parent=1 // pred_check
      _
    $region3: #{tpu_custom_call.1} parent=1 // pred_check_branch
      %12 = sbr.rel (0) target = $region5
    $region4: #{tpu_custom_call.1} parent=1 // pred_region
      _
    $region5: #{tpu_custom_call.1} parent=1 // pred_fallthru
      _
    // Predicated region
    $region6: #{tpu_custom_call.1} parent=1 // pred_check
      _
    $region7: #{tpu_custom_call.1} parent=1 // pred_check_branch
      %14 = sbr.rel (0) target = $region9
    $region8: #{tpu_custom_call.1} parent=1 // pred_region
      %s16 = ssub.s32 128, 128
      %17 = vsyncadd [#allocation3], %s16
      %s19 = sshll.u32 [#allocation2], 4
      %s20 = int_to_ptr.vmem [resolvable:$true] %s19
      %22 = dma.hbm_to_vmem [thread:$0]  %s1, 128, %s20, [#allocation3]
    $region9: #{tpu_custom_call.1} parent=1 // pred_fallthru
      _
    // Predicated region
    $region10: #{tpu_custom_call.1} parent=1 // pred_check
      _
    $region11: #{tpu_custom_call.1} parent=1 // pred_check_branch
      %24 = sbr.rel (0) target = $region13
    $region12: #{tpu_custom_call.1} parent=1 // pred_region
      _
    $region13: #{tpu_custom_call.1} parent=1 // pred_fallthru
      _
    // Predicated region
    $region14: #{tpu_custom_call.1} parent=1 // pred_check
      _
    $region15: #{tpu_custom_call.1} parent=1 // pred_check_branch
      %26 = sbr.rel (0) target = $region17
    $region16: #{tpu_custom_call.1} parent=1 // pred_region
      _
    $region17: #{tpu_custom_call.1} parent=1 // pred_fallthru
      _
    // Predicated region
    $region18: #{tpu_custom_call.1} parent=1 // pred_check
      _
    $region19: #{tpu_custom_call.1} parent=1 // pred_check_branch
      %28 = sbr.rel (0) target = $region21
    $region20: #{tpu_custom_call.1} parent=1 // pred_region
      %29 = dma.done [#allocation3], 128
    $region21: #{tpu_custom_call.1} parent=1 // pred_fallthru
      _
    %v30 = vld [vmem:[%s0] sm:$0xff]
    %v31 = vld [vmem:[#allocation2] sm:$0xff]
    %vm32 = vcmask 261120
    %v34 = vsel %vm32, %v30, 0
    %v37 = vsel %vm32, %v31, 0
    %39 = vmatprep.subr.mxu0 0.0
    %40 = vmatpush1.xpose.msra.mxu0 %v37
    %41 = vmatprep.subr.mxu0 0.0
    %42 = vmatpush1.xpose.msra.mxu0 0.0
    %43 = vmatprep.subr.mxu0 0.0
    %44 = vmatpush1.xpose.msra.mxu0 0.0
    %45 = vmatprep.subr.mxu0 0.0
    %46 = vmatpush1.xpose.msra.mxu0 0.0
    %47 = vmatprep.subr.mxu0 0.0
    %48 = vmatpush1.xpose.msra.mxu0 0.0
    %49 = vmatprep.subr.mxu0 0.0
    %50 = vmatpush1.xpose.msra.mxu0 0.0
    %51 = vmatprep.subr.mxu0 0.0
    %52 = vmatpush1.xpose.msra.mxu0 0.0
    %53 = vmatprep.subr.mxu0 0.0
    %54 = vmatpush1.xpose.msra.mxu0 0.0
    %55 = vmatprep.subr.mxu0 0.0
    %56 = vmatpush1.xpose.msra.mxu0 0.0
    %57 = vmatprep.subr.mxu0 0.0
    %58 = vmatpush1.xpose.msra.mxu0 0.0
    %59 = vmatprep.subr.mxu0 0.0
    %60 = vmatpush1.xpose.msra.mxu0 0.0
    %61 = vmatprep.subr.mxu0 0.0
    %62 = vmatpush1.xpose.msra.mxu0 0.0
    %63 = vmatprep.subr.mxu0 0.0
    %64 = vmatpush1.xpose.msra.mxu0 0.0
    %65 = vmatprep.subr.mxu0 0.0
    %66 = vmatpush1.xpose.msra.mxu0 0.0
    %67 = vmatprep.subr.mxu0 0.0
    %68 = vmatpush1.xpose.msra.mxu0 0.0
    %69 = vmatprep.subr.mxu0 0.0
    %70 = vmatpush1.xpose.msra.mxu0 0.0
    %71 = vmatprep.subr.mxu0 0.0
    %72 = vmatpush1.xpose.msra.mxu0 0.0
    %73 = vmatprep.subr.mxu0 0.0
    %74 = vmatpush1.xpose.msra.mxu0 0.0
    %75 = vmatprep.subr.mxu0 0.0
    %76 = vmatpush1.xpose.msra.mxu0 0.0
    %77 = vmatprep.subr.mxu0 0.0
    %78 = vmatpush1.xpose.msra.mxu0 0.0
    %79 = vmatprep.subr.mxu0 0.0
    %80 = vmatpush1.xpose.msra.mxu0 0.0
    %81 = vmatprep.subr.mxu0 0.0
    %82 = vmatpush1.xpose.msra.mxu0 0.0
    %83 = vmatprep.subr.mxu0 0.0
    %84 = vmatpush1.xpose.msra.mxu0 0.0
    %85 = vmatprep.subr.mxu0 0.0
    %86 = vmatpush1.xpose.msra.mxu0 0.0
    %87 = vmatprep.subr.mxu0 0.0
    %88 = vmatpush1.xpose.msra.mxu0 0.0
    %89 = vmatprep.subr.mxu0 0.0
    %90 = vmatpush1.xpose.msra.mxu0 0.0
    %91 = vmatprep.subr.mxu0 0.0
    %92 = vmatpush1.xpose.msra.mxu0 0.0
    %93 = vmatprep.subr.mxu0 0.0
    %94 = vmatpush1.xpose.msra.mxu0 0.0
    %95 = vmatprep.subr.mxu0 0.0
    %96 = vmatpush1.xpose.msra.mxu0 0.0
    %97 = vmatprep.subr.mxu0 0.0
    %98 = vmatpush1.xpose.msra.mxu0 0.0
    %99 = vmatprep.subr.mxu0 0.0
    %100 = vmatpush1.xpose.msra.mxu0 0.0
    %101 = vmatprep.subr.mxu0 0.0
    %102 = vmatpush1.xpose.msra.mxu0 0.0
    %103 = vmatprep.mubr.f32.mxu0 0.0
    %104 = vmatmul.mubr.f32.gmra.mrb[0].mxu0 %v34
    %v105 = vpop.f32.mrb[0].mxu0
    %v106 = vadd.f32 0.0, %v105
    %v107 = vpop.f32.mrb[0].mxu0
    %108 = vdwg.mxu0
    %v109 = vld [vmem:[%s2] sm:$0xff]
    %v110 = vld [vmem:[%s3] sm:$0x1]
    %112 = vset.pattern.permute.xlu0 0
    %113 = vperm.xlu0 %112, %v109
    %v114 = vpop.permute.xlu0 %113
    %v117 = vlaneseq
    %v118 = vshrl.u32 %v117, 7
    %v119 = vsub.s32 0, %v118
    %v120 = vrot.slane %v110, %v119
    %v122 = vmul.f32 %v114, %v120
    %v123 = vmax.f32 %v122, 2.5e-19
    %v124 = vrsqrt.pop %v123
    %v125 = vmul.f32 %v106, %v124
    %vm126 = vcmask 64512
    %127 = vst.msk [vmem:[#allocation5] sm:$0xff] %vm126, %v125
    // Predicated region
    $region22: #{tpu_custom_call.1} parent=1 // pred_check
      _
    $region23: #{tpu_custom_call.1} parent=1 // pred_check_branch
      %129 = sbr.rel (0) target = $region25
    $region24: #{tpu_custom_call.1} parent=1 // pred_region
      %s131 = ssub.s32 128, 128
      %132 = vsyncadd [#allocation4], %s131
      %s134 = sshll.u32 [#allocation5], 4
      %s135 = int_to_ptr.vmem [resolvable:$true] %s134
      %137 = dma.vmem_to_hbm [thread:$0]  %s135, 128, %s4, [#allocation4]
    $region25: #{tpu_custom_call.1} parent=1 // pred_fallthru
      _
    // Predicated region
    $region26: #{tpu_custom_call.1} parent=1 // pred_check
      _
    $region27: #{tpu_custom_call.1} parent=1 // pred_check_branch
      %139 = sbr.rel (0) target = $region29
    $region28: #{tpu_custom_call.1} parent=1 // pred_region
      %140 = dma.done [#allocation4], 128
    $region29: #{tpu_custom_call.1} parent=1 // pred_fallthru
      _
    %141 = vsyncpa [#allocation3], 1
    %142 = vsyncpa [#allocation4], 1

</llo_original>
